<compile_context>
chip_gen: v5e
topology: v5e:2x2
jax: 0.10.0
libtpu: 0.0.40
codegen_flags: <defaults>
</compile_context>

<pallas_src>
import functools
import numpy as np
import jax
import jax.numpy as jnp
from jax import lax
from jax.experimental import pallas as pl
from jax.experimental.pallas import tpu as pltpu


# ----------------------------- parameter / emb setup (plain JAX glue) -------
def make_freq(dim_in: int) -> jnp.ndarray:
    # torch: freq = 10000 ** arange(0, -1, -2/dim_in);
    #        freq = cat(freq, freq[:len(freq) - dim_in % 2])  -> shape (dim_in,)
    n = (dim_in + 1) // 2
    exps = -(2.0 / dim_in) * np.arange(n, dtype=np.float64)
    half = (10000.0 ** exps).astype(np.float32)
    full = np.concatenate([half, half[: n - dim_in % 2]])
    assert full.shape[0] == dim_in
    return jnp.asarray(full, dtype=jnp.float32)


def make_emb(freq: jnp.ndarray, dim_seq: int):
    dim_in = freq.shape[0]
    i = jnp.arange(dim_seq, dtype=freq.dtype)
    emb = (i[:, None] * freq[None, :]).reshape(1, dim_seq, 1, dim_in)
    return jnp.cos(emb), jnp.sin(emb)


# ----------------------------- table prep (run ONCE per model / seq len) ----
def make_rotary_tables(emb_cos, emb_sin, num_heads):
    """(1,S,1,D) cos/sin -> lane-dense (S, H*D) f32 cos table and sign-folded
    sin table.  Hoisted out of the per-call path so its HBM traffic is paid
    once, not on every forward."""
    S, D = emb_cos.shape[1], emb_cos.shape[3]
    H = num_heads
    F = H * D
    s = D - (D + 1) // 2                          # length of x2 in chunk(x, 2, -1)

    cos = jnp.broadcast_to(emb_cos.reshape(S, 1, D), (S, H, D)).reshape(S, F)
    sin = jnp.broadcast_to(emb_sin.reshape(S, 1, D), (S, H, D)).reshape(S, F)
    p = jnp.tile(jnp.arange(D), H)                # lane index within a head
    # rotate_half output lane j: -x2 for j < s, +x1 for j >= s -> fold the sign.
    sin_signed = jnp.where(p[None, :] < s, -sin, sin)
    return cos.astype(jnp.float32), sin_signed.astype(jnp.float32)


# ----------------------------- Pallas kernel (hot path) ---------------------
def _rotary_kernel(x_ref, cos_ref, sin_ref, o_ref, *, head_dim, split):
    # x_ref/o_ref: (TB, TS, F); cos_ref/sin_ref: (TS, F) f32.
    F = x_ref.shape[-1]
    shift_a = split % F                           # supplies the "+x1" lanes
    shift_b = (split - head_dim) % F              # supplies the "-x2" lanes

    cos = cos_ref[...]
    sin = sin_ref[...]                            # sign already folded in
    lane = lax.broadcasted_iota(jnp.int32, cos.shape, 1)
    use_b = (lane % head_dim) < split             # lanes fed by the x2 roll

    # Small static unroll over the batch block; each slab is 2-D and lane-dense.
    for b in range(x_ref.shape[0]):
        x = x_ref[b].astype(jnp.float32)          # (TS, F)
        ra = pltpu.roll(x, shift_a, 1)            # XLU slot
        rb = pltpu.roll(x, shift_b, 1)
        rot = jnp.where(use_b, rb, ra)
        o_ref[b] = (x * cos + rot * sin).astype(o_ref.dtype)


def _pick_block(B, S, F, itemsize, target_bytes=2 << 20, max_tb=8):
    # ~2 MiB of x per grid step (per-step overhead ~0.35us gets amortized).
    ts = target_bytes // max(1, F * itemsize)
    if ts < S:
        return 1, max(8, (ts // 8) * 8)           # sublane-aligned seq tile
    # Full sequence fits: also block over batch so blocks stay large.
    tb = max(1, min(B, max_tb, target_bytes // max(1, S * F * itemsize)))
    return tb, S


def rotary_forward(x, cos_t, sin_t):
    """Hot path: x (B,S,H,D), cos_t/sin_t precomputed (S, H*D) f32 tables."""
    B, S, H, D = x.shape
    F = H * D
    assert cos_t.shape == (S, F) and sin_t.shape == (S, F)
    split = D - (D + 1) // 2

    # Lane-dense flattening of (H, D) -> F (contiguous view).  F should be a
    # multiple of 128 for unmasked stores (true here: 4*32 = 128).
    xf = x.reshape(B, S, F)

    TB, TS = _pick_block(B, S, F, x.dtype.itemsize)
    # S-tile axis leading (megacore split lands on S), batch innermost so the
    # cos/sin blocks keep the same block index and are not re-DMA'd across B.
    grid = (pl.cdiv(S, TS), pl.cdiv(B, TB))

    out = pl.pallas_call(
        functools.partial(_rotary_kernel, head_dim=D, split=split),
        out_shape=jax.ShapeDtypeStruct((B, S, F), x.dtype),
        grid_spec=pl.GridSpec(
            grid=grid,
            in_specs=[
                pl.BlockSpec((TB, TS, F), lambda si, bi: (bi, si, 0)),   # x
                pl.BlockSpec((TS, F), lambda si, bi: (si, 0)),           # cos
                pl.BlockSpec((TS, F), lambda si, bi: (si, 0)),           # signed sin
            ],
            out_specs=pl.BlockSpec((TB, TS, F), lambda si, bi: (bi, si, 0)),
        ),
        compiler_params=pltpu.CompilerParams(
            dimension_semantics=("parallel", "parallel"),
            vmem_limit_bytes=48 << 20),
    )(xf, cos_t, sin_t)
    return out.reshape(B, S, H, D)


def rotary(x, emb_cos, emb_sin):
    """API parity with Rotary.forward(x, emb_cos, emb_sin).  Prefer calling
    make_rotary_tables once and rotary_forward per step (tables hoisted)."""
    cos_t, sin_t = make_rotary_tables(emb_cos, emb_sin, x.shape[2])
    return rotary_forward(x, cos_t, sin_t)


# ----------------------------- reference (for sanity check) -----------------
def rotary_ref(x, emb_cos, emb_sin):
    d = x.shape[-1]
    h = (d + 1) // 2
    x1, x2 = x[..., :h], x[..., h:]
    rot = jnp.concatenate([-x2, x1], axis=-1)
    return x * emb_cos + rot * emb_sin


if __name__ == "__main__":
    dim_in = 32
    batch, seq, heads = 2, 8, 4

    key = jax.random.PRNGKey(0)
    x = jax.random.normal(key, (batch, seq, heads, dim_in), dtype=jnp.float32)

    freq = make_freq(dim_in)
    emb_cos, emb_sin = make_emb(freq, seq)

    # Table prep is hoisted (paid once per model / sequence length).
    cos_t, sin_t = make_rotary_tables(emb_cos, emb_sin, heads)

    out = rotary_forward(x, cos_t, sin_t)
    out = jax.block_until_ready(out)

    expected = rotary_ref(x, emb_cos, emb_sin)
    np.testing.assert_allclose(np.asarray(out), np.asarray(expected),
                               rtol=1e-5, atol=1e-5)

    print("KERNEL_OK")
</pallas_src>

<mosaic_0001>
module attributes {stable_mosaic.version = 11 : i64} {
  func.func @_rotary_kernel(%arg0: i32, %arg1: i32, %arg2: memref<2x8x128xf32, #tpu.memory_space<vmem>>, %arg3: memref<8x128xf32, #tpu.memory_space<vmem>>, %arg4: memref<8x128xf32, #tpu.memory_space<vmem>>, %arg5: memref<2x8x128xf32, #tpu.memory_space<vmem>>) attributes {dimension_semantics = [#tpu.dimension_semantics<parallel>, #tpu.dimension_semantics<parallel>], iteration_bounds = array<i64: 1, 1>, scalar_prefetch = 0 : i64, scratch_operands = 0 : i64, tpu.core_type = #tpu.core_type<tc>, window_params = [{transform_indices = @transform_0, window_bounds = array<i64: 2, 8, 128>}, {transform_indices = @transform_1, window_bounds = array<i64: 8, 128>}, {transform_indices = @transform_2, window_bounds = array<i64: 8, 128>}, {transform_indices = @transform_3, window_bounds = array<i64: 2, 8, 128>}]} {
    %c0 = arith.constant 0 : index
    %c0_0 = arith.constant 0 : index
    %0 = vector.load %arg3[%c0, %c0_0] : memref<8x128xf32, #tpu.memory_space<vmem>>, vector<8x128xf32>
    %c0_1 = arith.constant 0 : index
    %c0_2 = arith.constant 0 : index
    %1 = vector.load %arg4[%c0_1, %c0_2] : memref<8x128xf32, #tpu.memory_space<vmem>>, vector<8x128xf32>
    %2 = tpu.iota {dimensions = array<i32: 1>} : vector<8x128xi32>
    %c32_i32 = arith.constant 32 : i32
    %c0_i32 = arith.constant 0 : i32
    %3 = arith.cmpi eq, %c32_i32, %c0_i32 : i32
    %c1_i32 = arith.constant 1 : i32
    %4 = arith.select %3, %c1_i32, %c32_i32 : i32
    %5 = vector.broadcast %4 : i32 to vector<8x128xi32>
    %6 = arith.remsi %2, %5 : vector<8x128xi32>
    %c0_i32_3 = arith.constant 0 : i32
    %7 = vector.broadcast %c0_i32_3 : i32 to vector<8x128xi32>
    %8 = arith.cmpi ne, %6, %7 : vector<8x128xi32>
    %c0_i32_4 = arith.constant 0 : i32
    %9 = vector.broadcast %c0_i32_4 : i32 to vector<8x128xi32>
    %10 = arith.cmpi slt, %6, %9 : vector<8x128xi32>
    %c0_i32_5 = arith.constant 0 : i32
    %11 = arith.cmpi slt, %4, %c0_i32_5 : i32
    %12 = vector.broadcast %11 : i1 to vector<8x128xi1>
    %13 = vector.broadcast %12 : vector<8x128xi1> to vector<8x128xi1>
    %14 = arith.xori %10, %13 : vector<8x128xi1>
    %15 = arith.andi %14, %8 : vector<8x128xi1>
    %16 = vector.broadcast %4 : i32 to vector<8x128xi32>
    %17 = arith.addi %6, %16 : vector<8x128xi32>
    %18 = arith.select %15, %17, %6 : vector<8x128xi1>, vector<8x128xi32>
    %c16_i32 = arith.constant 16 : i32
    %19 = vector.broadcast %c16_i32 : i32 to vector<8x128xi32>
    %20 = arith.cmpi slt, %18, %19 : vector<8x128xi32>
    %c0_6 = arith.constant 0 : index
    %c0_7 = arith.constant 0 : index
    %c0_8 = arith.constant 0 : index
    %21 = vector.load %arg2[%c0_6, %c0_7, %c0_8] : memref<2x8x128xf32, #tpu.memory_space<vmem>>, vector<1x8x128xf32>
    %22 = vector.shape_cast %21 : vector<1x8x128xf32> to vector<8x128xf32>
    %c16_i32_9 = arith.constant 16 : i32
    %23 = tpu.dynamic_rotate %22 by %c16_i32_9 dim 1 : vector<8x128xf32>, i32 -> vector<8x128xf32>
    %c112_i32 = arith.constant 112 : i32
    %24 = tpu.dynamic_rotate %22 by %c112_i32 dim 1 : vector<8x128xf32>, i32 -> vector<8x128xf32>
    %25 = arith.select %20, %24, %23 : vector<8x128xi1>, vector<8x128xf32>
    %26 = arith.mulf %22, %0 : vector<8x128xf32>
    %27 = arith.mulf %25, %1 : vector<8x128xf32>
    %28 = arith.addf %26, %27 : vector<8x128xf32>
    %c0_10 = arith.constant 0 : index
    %c0_11 = arith.constant 0 : index
    %c0_12 = arith.constant 0 : index
    %29 = vector.load %arg5[%c0_10, %c0_11, %c0_12] : memref<2x8x128xf32, #tpu.memory_space<vmem>>, vector<1x8x128xf32>
    %30 = vector.shape_cast %29 : vector<1x8x128xf32> to vector<8x128xf32>
    %31 = vector.shape_cast %28 : vector<8x128xf32> to vector<1x8x128xf32>
    tpu.vector_store %arg5[%c0_10, %c0_11, %c0_12], %31 {strides = array<i32>} : memref<2x8x128xf32, #tpu.memory_space<vmem>>, vector<1x8x128xf32>,
    %c1 = arith.constant 1 : index
    %c0_13 = arith.constant 0 : index
    %c0_14 = arith.constant 0 : index
    %32 = vector.load %arg2[%c1, %c0_13, %c0_14] : memref<2x8x128xf32, #tpu.memory_space<vmem>>, vector<1x8x128xf32>
    %33 = vector.shape_cast %32 : vector<1x8x128xf32> to vector<8x128xf32>
    %c16_i32_15 = arith.constant 16 : i32
    %34 = tpu.dynamic_rotate %33 by %c16_i32_15 dim 1 : vector<8x128xf32>, i32 -> vector<8x128xf32>
    %c112_i32_16 = arith.constant 112 : i32
    %35 = tpu.dynamic_rotate %33 by %c112_i32_16 dim 1 : vector<8x128xf32>, i32 -> vector<8x128xf32>
    %36 = arith.select %20, %35, %34 : vector<8x128xi1>, vector<8x128xf32>
    %37 = arith.mulf %33, %0 : vector<8x128xf32>
    %38 = arith.mulf %36, %1 : vector<8x128xf32>
    %39 = arith.addf %37, %38 : vector<8x128xf32>
    %c1_17 = arith.constant 1 : index
    %c0_18 = arith.constant 0 : index
    %c0_19 = arith.constant 0 : index
    %40 = vector.load %arg5[%c1_17, %c0_18, %c0_19] : memref<2x8x128xf32, #tpu.memory_space<vmem>>, vector<1x8x128xf32>
    %41 = vector.shape_cast %40 : vector<1x8x128xf32> to vector<8x128xf32>
    %42 = vector.shape_cast %39 : vector<8x128xf32> to vector<1x8x128xf32>
    tpu.vector_store %arg5[%c1_17, %c0_18, %c0_19], %42 {strides = array<i32>} : memref<2x8x128xf32, #tpu.memory_space<vmem>>, vector<1x8x128xf32>,
    return
  }
  func.func @transform_0(%arg0: i32, %arg1: i32) -> (i32, i32, i32) {
    %c0_i32 = arith.constant 0 : i32
    %c0_i32_0 = arith.constant 0 : i32
    return %arg1, %arg0, %c0_i32 : i32, i32, i32
  }
  func.func @transform_1(%arg0: i32, %arg1: i32) -> (i32, i32) {
    %c0_i32 = arith.constant 0 : i32
    %c0_i32_0 = arith.constant 0 : i32
    return %arg0, %c0_i32 : i32, i32
  }
  func.func @transform_2(%arg0: i32, %arg1: i32) -> (i32, i32) {
    %c0_i32 = arith.constant 0 : i32
    %c0_i32_0 = arith.constant 0 : i32
    return %arg0, %c0_i32 : i32, i32
  }
  func.func @transform_3(%arg0: i32, %arg1: i32) -> (i32, i32, i32) {
    %c0_i32 = arith.constant 0 : i32
    %c0_i32_0 = arith.constant 0 : i32
    return %arg1, %arg0, %c0_i32 : i32, i32, i32
  }
}

</mosaic_0001>

<llo_original>
// kernel: tpu_custom_call.1
$region0: #{tpu_custom_call.1}
  #allocation0 [shape = 'u32[]', space=smem, size = 0x4, offset = 0x4, fixed_abs, tag = 'smem constant byte address 0x4 - core index']
  #allocation1 [shape = 'u32[72,128]{1,0:T(1,128)}', space=vmem, size = 0x9000, scoped, tag = 'internal scratch']
  %s0 = inlined_call_operand.hbm [shape: f32[2,8,128], index: 0, kind: input, shape index: {}]
  %s1 = inlined_call_operand.hbm [shape: f32[8,128], index: 1, kind: input, shape index: {}]
  %s2 = inlined_call_operand.hbm [shape: f32[8,128], index: 2, kind: input, shape index: {}]
  %s3 = inlined_call_operand.hbm [shape: f32[2,8,128], index: 3, kind: output, shape index: {}]
  %s4 = sld [smem:[#allocation0]]
  $region34: #{tpu_custom_call.1} parent=0
    _
  %s6 = ssub.s32 1, %s4
  %s7 = scalar_select 0, %s6, %s4
  $region1: #{tpu_custom_call.1} parent=0
    #allocation2 [shape = 'u8[8192]{0}', space=vmem, size = 0x2000, scoped, tag = 'input window, operand 0, single buffered']
    #allocation3 [shape = 's32[1]{0}', space=sflag, size = 0x4, scoped, tag = 'scoped memory for tpu_custom_call.1']
    #allocation4 [shape = 's32[1]{0}', space=sflag, size = 0x4, scoped, tag = 'scoped memory for tpu_custom_call.1']
    #allocation5 [shape = 'u8[4096]{0}', space=vmem, size = 0x1000, scoped, tag = 'input window, operand 1, single buffered']
    #allocation6 [shape = 's32[1]{0}', space=sflag, size = 0x4, scoped, tag = 'scoped memory for tpu_custom_call.1']
    #allocation7 [shape = 'u8[4096]{0}', space=vmem, size = 0x1000, scoped, tag = 'input window, operand 2, single buffered']
    #allocation8 [shape = 'u8[8192]{0}', space=vmem, size = 0x2000, scoped, tag = 'output window, operand 0, single buffered']
    %8 = vsyncpa [#allocation3], 0
    %9 = vsyncpa [#allocation6], 0
    %10 = vsyncpa [#allocation4], 0
    // Predicated region
    $region2: #{tpu_custom_call.1} parent=1 // pred_check
      _
    $region3: #{tpu_custom_call.1} parent=1 // pred_check_branch
      %12 = sbr.rel (0) target = $region5
    $region4: #{tpu_custom_call.1} parent=1 // pred_region
      %14 = vsyncadd [#allocation3], 0
      %s15 = sshll.u32 %s0, 4
      %s16 = int_to_ptr.hbm [resolvable:$true] %s15
      %s17 = sshll.u32 [#allocation2], 4
      %s18 = int_to_ptr.vmem [resolvable:$true] %s17
      %23 = dma.hbm_to_vmem [thread:$0]  %s16, 256, %s18, [#allocation3], 128, 128, 8
    $region5: #{tpu_custom_call.1} parent=1 // pred_fallthru
      _
    // Predicated region
    $region6: #{tpu_custom_call.1} parent=1 // pred_check
      _
    $region7: #{tpu_custom_call.1} parent=1 // pred_check_branch
      %25 = sbr.rel (0) target = $region9
    $region8: #{tpu_custom_call.1} parent=1 // pred_region
      %27 = vsyncadd [#allocation6], 0
      %s29 = sshll.u32 %s1, 4
      %s30 = int_to_ptr.hbm [resolvable:$true] %s29
      %s31 = sshll.u32 [#allocation5], 4
      %s32 = int_to_ptr.vmem [resolvable:$true] %s31
      %34 = dma.hbm_to_vmem [thread:$0]  %s30, 128, %s32, [#allocation6]
    $region9: #{tpu_custom_call.1} parent=1 // pred_fallthru
      _
    // Predicated region
    $region10: #{tpu_custom_call.1} parent=1 // pred_check
      _
    $region11: #{tpu_custom_call.1} parent=1 // pred_check_branch
      %36 = sbr.rel (0) target = $region13
    $region12: #{tpu_custom_call.1} parent=1 // pred_region
      %38 = vsyncadd [#allocation6], 0
      %s40 = sshll.u32 %s2, 4
      %s41 = int_to_ptr.hbm [resolvable:$true] %s40
      %s42 = sshll.u32 [#allocation7], 4
      %s43 = int_to_ptr.vmem [resolvable:$true] %s42
      %45 = dma.hbm_to_vmem [thread:$0]  %s41, 128, %s43, [#allocation6]
    $region13: #{tpu_custom_call.1} parent=1 // pred_fallthru
      _
    // Predicated region
    $region14: #{tpu_custom_call.1} parent=1 // pred_check
      _
    $region15: #{tpu_custom_call.1} parent=1 // pred_check_branch
      %47 = sbr.rel (0) target = $region17
    $region16: #{tpu_custom_call.1} parent=1 // pred_region
      %49 = dma.done [#allocation3], 256
    $region17: #{tpu_custom_call.1} parent=1 // pred_fallthru
      _
    // Predicated region
    $region18: #{tpu_custom_call.1} parent=1 // pred_check
      _
    $region19: #{tpu_custom_call.1} parent=1 // pred_check_branch
      %51 = sbr.rel (0) target = $region21
    $region20: #{tpu_custom_call.1} parent=1 // pred_region
      %53 = dma.done [#allocation6], 128
    $region21: #{tpu_custom_call.1} parent=1 // pred_fallthru
      _
    // Predicated region
    $region22: #{tpu_custom_call.1} parent=1 // pred_check
      _
    $region23: #{tpu_custom_call.1} parent=1 // pred_check_branch
      %55 = sbr.rel (0) target = $region25
    $region24: #{tpu_custom_call.1} parent=1 // pred_region
      %57 = dma.done [#allocation6], 128
    $region25: #{tpu_custom_call.1} parent=1 // pred_fallthru
      _
    %v58 = vld [vmem:[#allocation5] sm:$0xff]
    %v59 = vld [vmem:[#allocation7] sm:$0xff]
    %v60 = vlaneseq
    %v61 = vand.u32 %v60, 127
    %vm62 = vcmp.lt.s32.totalorder %v61, 0
    %v63 = vsub.s32 0, %v61
    %v64 = vsel %vm62, %v63, %v61
    %v65 = vshrl.u32 %v64, 5
    %v66 = vand.u32 %v64, 31
    %v67 = vsub.s32 0, %v66
    %v68 = vsel %vm62, %v67, %v66
    %vm69 = vcmp.ne.s32.totalorder %v68, 0
    %vm70 = vcmp.lt.s32.totalorder %v68, 0
    %vm71 = vmand %vm70, %vm69
    %v72 = vadd.s32 %v68, 32
    %v73 = vsel %vm71, %v72, %v68
    %vm74 = vcmp.lt.s32.totalorder %v73, 16
    %v75 = vld [vmem:[#allocation2] sm:$0xff]
    %76 = vrot.lane.b32.xlu0 %v75, 16
    %v77 = vpop.permute.xlu0 %76
    %78 = vrot.lane.b32.xlu0 %v75, 112
    %v79 = vpop.permute.xlu0 %78
    %v80 = vsel %vm74, %v79, %v77
    %v81 = vmul.f32 %v75, %v58
    %v82 = vmul.f32 %v80, %v59
    %v83 = vadd.f32 %v81, %v82
    %84 = vst [vmem:[#allocation8] sm:$0xff] %v83
    %s85 = scalar_lea.vmem [#allocation2], 8
    %v86 = vld [vmem:[%s85] sm:$0xff]
    %87 = vrot.lane.b32.xlu0 %v86, 16
    %v88 = vpop.permute.xlu0 %87
    %89 = vrot.lane.b32.xlu0 %v86, 112
    %v90 = vpop.permute.xlu0 %89
    %v91 = vsel %vm74, %v90, %v88
    %v92 = vmul.f32 %v86, %v58
    %v93 = vmul.f32 %v91, %v59
    %v94 = vadd.f32 %v92, %v93
    %s95 = scalar_lea.vmem [#allocation8], 8
    %96 = vst [vmem:[%s95] sm:$0xff] %v94
    // Predicated region
    $region26: #{tpu_custom_call.1} parent=1 // pred_check
      _
    $region27: #{tpu_custom_call.1} parent=1 // pred_check_branch
      %98 = sbr.rel (0) target = $region29
    $region28: #{tpu_custom_call.1} parent=1 // pred_region
      %100 = vsyncadd [#allocation4], 0
      %s101 = sshll.u32 [#allocation8], 4
      %s102 = int_to_ptr.vmem [resolvable:$true] %s101
      %s103 = sshll.u32 %s3, 4
      %s104 = int_to_ptr.hbm [resolvable:$true] %s103
      %109 = dma.vmem_to_hbm [thread:$0]  %s102, 256, %s104, [#allocation4], 128, 128, 8
    $region29: #{tpu_custom_call.1} parent=1 // pred_fallthru
      _
    // Predicated region
    $region30: #{tpu_custom_call.1} parent=1 // pred_check
      _
    $region31: #{tpu_custom_call.1} parent=1 // pred_check_branch
      %111 = sbr.rel (0) target = $region33
    $region32: #{tpu_custom_call.1} parent=1 // pred_region
      %113 = dma.done [#allocation4], 256
    $region33: #{tpu_custom_call.1} parent=1 // pred_fallthru
      _
    %114 = vsyncpa [#allocation3], 1
    %115 = vsyncpa [#allocation6], 1
    %116 = vsyncpa [#allocation4], 1

</llo_original>
